<compile_context>
chip_gen: v5e
topology: v5e:2x2
jax: 0.10.0
libtpu: 0.0.40
codegen_flags: <defaults>
</compile_context>

<pallas_src>
import functools

import numpy as np
import jax
import jax.numpy as jnp
from jax import lax
from jax.experimental import pallas as pl
from jax.experimental.pallas import tpu as pltpu

_HIDDEN = 64        # all hidden channel dims padded to 64
_IN_CH = 10
_N_LAYERS = 5       # conv1, conv2, conv3, fc1, fc2


def _round_up(x, m):
    return ((x + m - 1) // m) * m


# ----------------------------- Pallas kernel ------------------------------ #
def _dqn_kernel(x_ref, w_ref, b_ref, o_ref, *, a_pad):
    """One batch tile.  Activations are (C, TB): features on sublanes,
    batch on lanes (lane-dense)."""
    h = x_ref[...]                                        # (64, TB)
    for k in range(_N_LAYERS - 1):                        # conv1..conv3, fc1 (+ReLU)
        w = w_ref[64 * k:64 * (k + 1), :]                 # (64, 64), static slice
        b = b_ref[64 * k:64 * (k + 1), :]                 # (64, 1), lane-broadcast
        h = jnp.maximum(
            jnp.dot(w, h, preferred_element_type=jnp.float32) + b, 0.0)
    w = w_ref[64 * 4:64 * 4 + a_pad, :]                   # fc2 (no activation)
    b = b_ref[64 * 4:64 * 4 + a_pad, :]
    o_ref[...] = jnp.dot(w, h, preferred_element_type=jnp.float32) + b


# -------------------- one-time parameter preprocessing --------------------- #
def prepare_params(params):
    """Pack PyTorch-layout weights into two zero-padded VMEM-friendly slabs.

    In the (Cout x Cin) orientation the PyTorch weights are used as-is:
    conv center tap w[:, :, 1, 1] is (Cout, Cin); fc weight is (Out, In).
    Zero padding to 64 rows/cols keeps the math exact (padded rows stay 0).
    """
    out_size = params["fc2_w"].shape[0]
    a_pad = max(8, _round_up(out_size, 8))

    def pad_to(w, rows, cols):
        w = jnp.asarray(w, jnp.float32)
        return jnp.pad(w, ((0, rows - w.shape[0]), (0, cols - w.shape[1])))

    ws = [
        pad_to(params["conv1_w"][:, :, 1, 1], _HIDDEN, _HIDDEN),   # (16,10)
        pad_to(params["conv2_w"][:, :, 1, 1], _HIDDEN, _HIDDEN),   # (32,16)
        pad_to(params["conv3_w"][:, :, 1, 1], _HIDDEN, _HIDDEN),   # (64,32)
        pad_to(params["fc1_w"],               _HIDDEN, _HIDDEN),   # (64,64)
        pad_to(params["fc2_w"],               a_pad,   _HIDDEN),   # (A,64)
    ]
    bs = [
        pad_to(params["conv1_b"].reshape(-1, 1), _HIDDEN, 1),
        pad_to(params["conv2_b"].reshape(-1, 1), _HIDDEN, 1),
        pad_to(params["conv3_b"].reshape(-1, 1), _HIDDEN, 1),
        pad_to(params["fc1_b"].reshape(-1, 1),   _HIDDEN, 1),
        pad_to(params["fc2_b"].reshape(-1, 1),   a_pad,   1),
    ]
    return {
        "w_slab": jnp.concatenate(ws, axis=0),   # (4*64 + a_pad, 64)
        "b_slab": jnp.concatenate(bs, axis=0),   # (4*64 + a_pad, 1)
        "out_size": out_size,
        "a_pad": a_pad,
    }


# ------------------------------ forward pass -------------------------------- #
@functools.partial(jax.jit, static_argnames=("out_size", "a_pad", "tile_b"))
def _dqn_forward_impl(x_nchw, w_slab, b_slab, *, out_size, a_pad, tile_b):
    B = x_nchw.shape[0]
    # (B, 10, 1, 1) -> (10, B): batch on lanes, features on sublanes.
    x = jnp.transpose(x_nchw.reshape(B, _IN_CH).astype(jnp.float32), (1, 0))
    b_pad = _round_up(max(B, 1), tile_b)
    xp = jnp.pad(x, ((0, _HIDDEN - _IN_CH), (0, b_pad - B)))   # (64, b_pad)

    w_shape = (w_slab.shape[0], w_slab.shape[1])
    b_shape = (b_slab.shape[0], b_slab.shape[1])

    out = pl.pallas_call(
        functools.partial(_dqn_kernel, a_pad=a_pad),
        out_shape=jax.ShapeDtypeStruct((a_pad, b_pad), jnp.float32),
        grid=(b_pad // tile_b,),
        in_specs=[
            pl.BlockSpec((_HIDDEN, tile_b), lambda i: (0, i)),   # x: pipelined
            pl.BlockSpec(w_shape, lambda i: (0, 0)),             # weights: resident
            pl.BlockSpec(b_shape, lambda i: (0, 0)),             # biases: resident
        ],
        out_specs=pl.BlockSpec((a_pad, tile_b), lambda i: (0, i)),
        compiler_params=pltpu.CompilerParams(
            dimension_semantics=("parallel",)),                  # megacore on v7x
    )(xp, w_slab, b_slab)

    # Slice off channel/batch padding and return PyTorch-style (B, A).
    return jnp.transpose(out[:out_size, :B], (1, 0))


def dqn_forward(x_nchw, prepared, tile_b=None):
    """x_nchw: (B, 10, 1, 1); prepared: output of prepare_params()."""
    B = x_nchw.shape[0]
    assert x_nchw.shape[1:] == (_IN_CH, 1, 1), "model requires (B, 10, 1, 1) input"
    if tile_b is None:
        # Lane-aligned batch tile; bounded so the double-buffered x/out tiles
        # stay far under the scoped VMEM limit on every generation (incl. v7x).
        tile_b = min(1024, _round_up(max(B, 1), 128))
    return _dqn_forward_impl(
        x_nchw, prepared["w_slab"], prepared["b_slab"],
        out_size=prepared["out_size"], a_pad=prepared["a_pad"], tile_b=tile_b)


# --------------------------- pure-JAX reference ---------------------------- #
def dqn_reference(x_nchw, params):
    """Full NCHW conv reference (lax.conv), to validate kernel semantics."""
    def conv(x, w, b):
        y = lax.conv_general_dilated(
            x, w, window_strides=(1, 1), padding=((1, 1), (1, 1)),
            dimension_numbers=("NCHW", "OIHW", "NCHW"))
        return jax.nn.relu(y + b.reshape(1, -1, 1, 1))

    x = x_nchw.astype(jnp.float32)
    x = conv(x, params["conv1_w"], params["conv1_b"])
    x = conv(x, params["conv2_w"], params["conv2_b"])
    x = conv(x, params["conv3_w"], params["conv3_b"])
    x = x.reshape(x.shape[0], -1)                                  # flatten
    x = jax.nn.relu(x @ params["fc1_w"].T + params["fc1_b"])       # fc1
    x = x @ params["fc2_w"].T + params["fc2_b"]                    # fc2
    return x


# ------------------------------ param init --------------------------------- #
def init_params(key, output_size):
    """Deterministic init matching PyTorch default shapes."""
    def uniform(key, shape, fan_in):
        bound = 1.0 / np.sqrt(fan_in)
        return jax.random.uniform(key, shape, jnp.float32, -bound, bound)

    ks = jax.random.split(key, 10)
    p = {}
    p["conv1_w"] = uniform(ks[0], (16, 10, 3, 3), 10 * 9)
    p["conv1_b"] = uniform(ks[1], (16,),          10 * 9)
    p["conv2_w"] = uniform(ks[2], (32, 16, 3, 3), 16 * 9)
    p["conv2_b"] = uniform(ks[3], (32,),          16 * 9)
    p["conv3_w"] = uniform(ks[4], (64, 32, 3, 3), 32 * 9)
    p["conv3_b"] = uniform(ks[5], (64,),          32 * 9)
    p["fc1_w"]   = uniform(ks[6], (64, 64),       64)
    p["fc1_b"]   = uniform(ks[7], (64,),          64)
    p["fc2_w"]   = uniform(ks[8], (output_size, 64), 64)
    p["fc2_b"]   = uniform(ks[9], (output_size,),    64)
    return p


# --------------------------------- main ------------------------------------ #
if __name__ == "__main__":
    key = jax.random.PRNGKey(0)
    k_x, k_p, k_x2 = jax.random.split(key, 3)

    output_size = 4
    params = init_params(k_p, output_size)
    prepared = prepare_params(params)            # one-time weight packing

    # Small batch (typical DQN single-step inference).
    batch = 2
    x = jax.random.normal(k_x, (batch, _IN_CH, 1, 1), dtype=jnp.float32)
    out = jax.block_until_ready(dqn_forward(x, prepared))
    ref = jax.block_until_ready(dqn_reference(x, params))
    assert out.shape == (batch, output_size)
    np.testing.assert_allclose(np.asarray(out), np.asarray(ref),
                               rtol=1e-5, atol=1e-5)

    # Larger batch: exercises the batch-tiled grid (3 tiles of 128) + padding.
    x2 = jax.random.normal(k_x2, (300, _IN_CH, 1, 1), dtype=jnp.float32)
    out2 = jax.block_until_ready(dqn_forward(x2, prepared, tile_b=128))
    ref2 = jax.block_until_ready(dqn_reference(x2, params))
    assert out2.shape == (300, output_size)
    np.testing.assert_allclose(np.asarray(out2), np.asarray(ref2),
                               rtol=1e-5, atol=1e-5)

    print("KERNEL_OK")
</pallas_src>

<mosaic_0001>
module attributes {stable_mosaic.version = 11 : i64} {
  func.func @_dqn_kernel(%arg0: i32, %arg1: memref<64x128xf32, #tpu.memory_space<vmem>>, %arg2: memref<264x64xf32, #tpu.memory_space<vmem>>, %arg3: memref<264x1xf32, #tpu.memory_space<vmem>>, %arg4: memref<8x128xf32, #tpu.memory_space<vmem>>) attributes {dimension_semantics = [#tpu.dimension_semantics<parallel>], iteration_bounds = array<i64: 1>, scalar_prefetch = 0 : i64, scratch_operands = 0 : i64, tpu.core_type = #tpu.core_type<tc>, window_params = [{transform_indices = @transform_0, window_bounds = array<i64: 64, 128>}, {pipeline_mode = #tpu.pipeline_mode<synchronous>, transform_indices = @transform_1, window_bounds = array<i64: 264, 64>}, {pipeline_mode = #tpu.pipeline_mode<synchronous>, transform_indices = @transform_2, window_bounds = array<i64: 264, 1>}, {transform_indices = @transform_3, window_bounds = array<i64: 8, 128>}]} {
    %c0 = arith.constant 0 : index
    %c0_0 = arith.constant 0 : index
    %0 = vector.load %arg1[%c0, %c0_0] : memref<64x128xf32, #tpu.memory_space<vmem>>, vector<64x128xf32>
    %c0_1 = arith.constant 0 : index
    %c0_2 = arith.constant 0 : index
    %1 = vector.load %arg2[%c0_1, %c0_2] : memref<264x64xf32, #tpu.memory_space<vmem>>, vector<64x64xf32>
    %c0_3 = arith.constant 0 : index
    %c0_4 = arith.constant 0 : index
    %2 = vector.load %arg3[%c0_3, %c0_4] : memref<264x1xf32, #tpu.memory_space<vmem>>, vector<64x1xf32>
    %cst = arith.constant dense<0.000000e+00> : vector<64x128xf32>
    %3 = tpu.matmul %1, %0, %cst {dimension_numbers = #tpu.dot_dimension_numbers<[1], [0], [0], [1], [0, 0, 1, 1], [], []>} : vector<64x64xf32>, vector<64x128xf32>, vector<64x128xf32> -> vector<64x128xf32>
    %4 = vector.broadcast %2 : vector<64x1xf32> to vector<64x128xf32>
    %5 = arith.addf %3, %4 : vector<64x128xf32>
    %cst_5 = arith.constant 0.000000e+00 : f32
    %6 = vector.broadcast %cst_5 : f32 to vector<64x128xf32>
    %7 = arith.maximumf %5, %6 : vector<64x128xf32>
    %c64 = arith.constant 64 : index
    %c0_6 = arith.constant 0 : index
    %8 = vector.load %arg2[%c64, %c0_6] : memref<264x64xf32, #tpu.memory_space<vmem>>, vector<64x64xf32>
    %c64_7 = arith.constant 64 : index
    %c0_8 = arith.constant 0 : index
    %9 = vector.load %arg3[%c64_7, %c0_8] : memref<264x1xf32, #tpu.memory_space<vmem>>, vector<64x1xf32>
    %cst_9 = arith.constant dense<0.000000e+00> : vector<64x128xf32>
    %10 = tpu.matmul %8, %7, %cst_9 {dimension_numbers = #tpu.dot_dimension_numbers<[1], [0], [0], [1], [0, 0, 1, 1], [], []>} : vector<64x64xf32>, vector<64x128xf32>, vector<64x128xf32> -> vector<64x128xf32>
    %11 = vector.broadcast %9 : vector<64x1xf32> to vector<64x128xf32>
    %12 = arith.addf %10, %11 : vector<64x128xf32>
    %cst_10 = arith.constant 0.000000e+00 : f32
    %13 = vector.broadcast %cst_10 : f32 to vector<64x128xf32>
    %14 = arith.maximumf %12, %13 : vector<64x128xf32>
    %c128 = arith.constant 128 : index
    %c0_11 = arith.constant 0 : index
    %15 = vector.load %arg2[%c128, %c0_11] : memref<264x64xf32, #tpu.memory_space<vmem>>, vector<64x64xf32>
    %c128_12 = arith.constant 128 : index
    %c0_13 = arith.constant 0 : index
    %16 = vector.load %arg3[%c128_12, %c0_13] : memref<264x1xf32, #tpu.memory_space<vmem>>, vector<64x1xf32>
    %cst_14 = arith.constant dense<0.000000e+00> : vector<64x128xf32>
    %17 = tpu.matmul %15, %14, %cst_14 {dimension_numbers = #tpu.dot_dimension_numbers<[1], [0], [0], [1], [0, 0, 1, 1], [], []>} : vector<64x64xf32>, vector<64x128xf32>, vector<64x128xf32> -> vector<64x128xf32>
    %18 = vector.broadcast %16 : vector<64x1xf32> to vector<64x128xf32>
    %19 = arith.addf %17, %18 : vector<64x128xf32>
    %cst_15 = arith.constant 0.000000e+00 : f32
    %20 = vector.broadcast %cst_15 : f32 to vector<64x128xf32>
    %21 = arith.maximumf %19, %20 : vector<64x128xf32>
    %c192 = arith.constant 192 : index
    %c0_16 = arith.constant 0 : index
    %22 = vector.load %arg2[%c192, %c0_16] : memref<264x64xf32, #tpu.memory_space<vmem>>, vector<64x64xf32>
    %c192_17 = arith.constant 192 : index
    %c0_18 = arith.constant 0 : index
    %23 = vector.load %arg3[%c192_17, %c0_18] : memref<264x1xf32, #tpu.memory_space<vmem>>, vector<64x1xf32>
    %cst_19 = arith.constant dense<0.000000e+00> : vector<64x128xf32>
    %24 = tpu.matmul %22, %21, %cst_19 {dimension_numbers = #tpu.dot_dimension_numbers<[1], [0], [0], [1], [0, 0, 1, 1], [], []>} : vector<64x64xf32>, vector<64x128xf32>, vector<64x128xf32> -> vector<64x128xf32>
    %25 = vector.broadcast %23 : vector<64x1xf32> to vector<64x128xf32>
    %26 = arith.addf %24, %25 : vector<64x128xf32>
    %cst_20 = arith.constant 0.000000e+00 : f32
    %27 = vector.broadcast %cst_20 : f32 to vector<64x128xf32>
    %28 = arith.maximumf %26, %27 : vector<64x128xf32>
    %c256 = arith.constant 256 : index
    %c0_21 = arith.constant 0 : index
    %29 = vector.load %arg2[%c256, %c0_21] : memref<264x64xf32, #tpu.memory_space<vmem>>, vector<8x64xf32>
    %c256_22 = arith.constant 256 : index
    %c0_23 = arith.constant 0 : index
    %30 = vector.load %arg3[%c256_22, %c0_23] : memref<264x1xf32, #tpu.memory_space<vmem>>, vector<8x1xf32>
    %cst_24 = arith.constant dense<0.000000e+00> : vector<8x128xf32>
    %31 = tpu.matmul %29, %28, %cst_24 {dimension_numbers = #tpu.dot_dimension_numbers<[1], [0], [0], [1], [0, 0, 1, 1], [], []>} : vector<8x64xf32>, vector<64x128xf32>, vector<8x128xf32> -> vector<8x128xf32>
    %32 = vector.broadcast %30 : vector<8x1xf32> to vector<8x128xf32>
    %33 = arith.addf %31, %32 : vector<8x128xf32>
    %c0_25 = arith.constant 0 : index
    %c0_26 = arith.constant 0 : index
    %34 = vector.load %arg4[%c0_25, %c0_26] : memref<8x128xf32, #tpu.memory_space<vmem>>, vector<8x128xf32>
    tpu.vector_store %arg4[%c0_25, %c0_26], %33 {strides = array<i32>} : memref<8x128xf32, #tpu.memory_space<vmem>>, vector<8x128xf32>,
    return
  }
  func.func @transform_0(%arg0: i32) -> (i32, i32) {
    %c0_i32 = arith.constant 0 : i32
    %c0_i32_0 = arith.constant 0 : i32
    return %c0_i32, %arg0 : i32, i32
  }
  func.func @transform_1(%arg0: i32) -> (i32, i32) {
    %c0_i32 = arith.constant 0 : i32
    %c0_i32_0 = arith.constant 0 : i32
    %c0_i32_1 = arith.constant 0 : i32
    return %c0_i32, %c0_i32_0 : i32, i32
  }
  func.func @transform_2(%arg0: i32) -> (i32, i32) {
    %c0_i32 = arith.constant 0 : i32
    %c0_i32_0 = arith.constant 0 : i32
    %c0_i32_1 = arith.constant 0 : i32
    return %c0_i32, %c0_i32_0 : i32, i32
  }
  func.func @transform_3(%arg0: i32) -> (i32, i32) {
    %c0_i32 = arith.constant 0 : i32
    %c0_i32_0 = arith.constant 0 : i32
    return %c0_i32, %arg0 : i32, i32
  }
}

</mosaic_0001>

<llo_original>
// kernel: _dqn_forward_impl.1
$region0: #{_dqn_forward_impl.1}
  #allocation0 [shape = 'u32[]', space=smem, size = 0x4, offset = 0x4, fixed_abs, tag = 'smem constant byte address 0x4 - core index']
  #allocation1 [shape = 'u32[72,128]{1,0:T(1,128)}', space=vmem, size = 0x9000, scoped, tag = 'internal scratch']
  %s0 = inlined_call_operand.vmem [shape: f32[64,128], index: 0, kind: input, shape index: {}]
  %s1 = inlined_call_operand.vmem [shape: f32[264,64], index: 1, kind: input, shape index: {}]
  %s2 = inlined_call_operand.vmem [shape: f32[264,1], index: 2, kind: input, shape index: {}]
  %s3 = inlined_call_operand.vmem [shape: f32[8,128], index: 3, kind: output, shape index: {}]
  %s4 = sld [smem:[#allocation0]]
  $region22: #{_dqn_forward_impl.1} parent=0
    _
  %s6 = ssub.s32 1, %s4
  %s7 = scalar_select 0, %s6, %s4
  // Predicated region
  $region2: #{_dqn_forward_impl.1} parent=0 // pred_check
    _
  $region3: #{_dqn_forward_impl.1} parent=0 // pred_check_branch
    %9 = sbr.rel (0) target = $region5
  $region4: #{_dqn_forward_impl.1} parent=0 // pred_region
    _
  $region5: #{_dqn_forward_impl.1} parent=0 // pred_fallthru
    _
  // Predicated region
  $region6: #{_dqn_forward_impl.1} parent=0 // pred_check
    _
  $region7: #{_dqn_forward_impl.1} parent=0 // pred_check_branch
    %11 = sbr.rel (0) target = $region9
  $region8: #{_dqn_forward_impl.1} parent=0 // pred_region
    _
  $region9: #{_dqn_forward_impl.1} parent=0 // pred_fallthru
    _
  // Predicated region
  $region10: #{_dqn_forward_impl.1} parent=0 // pred_check
    _
  $region11: #{_dqn_forward_impl.1} parent=0 // pred_check_branch
    %13 = sbr.rel (0) target = $region13
  $region12: #{_dqn_forward_impl.1} parent=0 // pred_region
    _
  $region13: #{_dqn_forward_impl.1} parent=0 // pred_fallthru
    _
  %v14 = vld [vmem:[%s0] sm:$0xff]
  %v15 = vld [vmem:[%s0 + $0x8] sm:$0xff]
  %v16 = vld [vmem:[%s0 + $0x10] sm:$0xff]
  %v17 = vld [vmem:[%s0 + $0x18] sm:$0xff]
  %v18 = vld [vmem:[%s0 + $0x20] sm:$0xff]
  %v19 = vld [vmem:[%s0 + $0x28] sm:$0xff]
  %v20 = vld [vmem:[%s0 + $0x30] sm:$0xff]
  %v21 = vld [vmem:[%s0 + $0x38] sm:$0xff]
  %v22 = vld [vmem:[%s1] sm:$0xff]
  %v23 = vld [vmem:[%s1 + $0x8] sm:$0xff]
  %v24 = vld [vmem:[%s1 + $0x10] sm:$0xff]
  %v25 = vld [vmem:[%s1 + $0x18] sm:$0xff]
  %v26 = vld [vmem:[%s1 + $0x20] sm:$0xff]
  %v27 = vld [vmem:[%s1 + $0x28] sm:$0xff]
  %v28 = vld [vmem:[%s1 + $0x30] sm:$0xff]
  %v29 = vld [vmem:[%s1 + $0x38] sm:$0xff]
  %v30 = vld [vmem:[%s2] sm:$0xff]
  %v31 = vld [vmem:[%s2 + $0x8] sm:$0xff]
  %v32 = vld [vmem:[%s2 + $0x10] sm:$0xff]
  %v33 = vld [vmem:[%s2 + $0x18] sm:$0xff]
  %v34 = vld [vmem:[%s2 + $0x20] sm:$0xff]
  %v35 = vld [vmem:[%s2 + $0x28] sm:$0xff]
  %v36 = vld [vmem:[%s2 + $0x30] sm:$0xff]
  %v37 = vld [vmem:[%s2 + $0x38] sm:$0xff]
  %39 = vset.pattern.permute.xlu0 0
  %40 = vperm.xlu0 %39, %v30
  %v41 = vpop.permute.xlu0 %40
  %44 = vset.pattern.permute.xlu0 0
  %45 = vperm.xlu0 %44, %v31
  %v46 = vpop.permute.xlu0 %45
  %49 = vset.pattern.permute.xlu0 0
  %50 = vperm.xlu0 %49, %v32
  %v51 = vpop.permute.xlu0 %50
  %54 = vset.pattern.permute.xlu0 0
  %55 = vperm.xlu0 %54, %v33
  %v56 = vpop.permute.xlu0 %55
  %59 = vset.pattern.permute.xlu0 0
  %60 = vperm.xlu0 %59, %v34
  %v61 = vpop.permute.xlu0 %60
  %64 = vset.pattern.permute.xlu0 0
  %65 = vperm.xlu0 %64, %v35
  %v66 = vpop.permute.xlu0 %65
  %69 = vset.pattern.permute.xlu0 0
  %70 = vperm.xlu0 %69, %v36
  %v71 = vpop.permute.xlu0 %70
  %74 = vset.pattern.permute.xlu0 0
  %75 = vperm.xlu0 %74, %v37
  %v76 = vpop.permute.xlu0 %75
  %vm78 = vcmask 523264
  %v80 = vsel %vm78, %v22, 0
  %v83 = vsel %vm78, %v23, 0
  %v86 = vsel %vm78, %v24, 0
  %v89 = vsel %vm78, %v25, 0
  %v92 = vsel %vm78, %v26, 0
  %v95 = vsel %vm78, %v27, 0
  %v98 = vsel %vm78, %v28, 0
  %v101 = vsel %vm78, %v29, 0
  %103 = vmatpush.msra.mxu0 0.0
  %104 = vmatpush.msra.mxu0 0.0
  %105 = vmatpush.msra.mxu0 0.0
  %106 = vmatpush.msra.mxu0 0.0
  %107 = vmatpush.msra.mxu0 0.0
  %108 = vmatpush.msra.mxu0 0.0
  %109 = vmatpush.msra.mxu0 0.0
  %110 = vmatpush.msra.mxu0 0.0
  %111 = vmatpush.msra.mxu0 %v21
  %112 = vmatpush.msra.mxu0 %v20
  %113 = vmatpush.msra.mxu0 %v19
  %114 = vmatpush.msra.mxu0 %v18
  %115 = vmatpush.msra.mxu0 %v17
  %116 = vmatpush.msra.mxu0 %v16
  %117 = vmatpush.msra.mxu0 %v15
  %118 = vmatpush.msra.mxu0 %v14
  %119 = vmatmul.f32.gmra.mxu0 %v80
  %v120 = vpop.f32.mrf.mxu0
  %v121 = vadd.f32 %v41, %v120
  %122 = vmatmul.f32.gmra.mxu0 %v83
  %v123 = vpop.f32.mrf.mxu0
  %v124 = vadd.f32 %v46, %v123
  %125 = vmatmul.f32.gmra.mxu0 %v86
  %v126 = vpop.f32.mrf.mxu0
  %v127 = vadd.f32 %v51, %v126
  %128 = vmatmul.f32.gmra.mxu0 %v89
  %v129 = vpop.f32.mrf.mxu0
  %v130 = vadd.f32 %v56, %v129
  %131 = vmatmul.f32.gmra.mxu0 %v92
  %v132 = vpop.f32.mrf.mxu0
  %v133 = vadd.f32 %v61, %v132
  %134 = vmatmul.f32.gmra.mxu0 %v95
  %v135 = vpop.f32.mrf.mxu0
  %v136 = vadd.f32 %v66, %v135
  %137 = vmatmul.f32.gmra.mxu0 %v98
  %v138 = vpop.f32.mrf.mxu0
  %v139 = vadd.f32 %v71, %v138
  %140 = vmatmul.f32.gmra.mxu0 %v101
  %v141 = vpop.f32.mrf.mxu0
  %v142 = vadd.f32 %v76, %v141
  %143 = vdwg.mxu0
  %v144 = vmax.f32 %v121, 0.0
  %v145 = vmax.f32 %v124, 0.0
  %v146 = vmax.f32 %v127, 0.0
  %v147 = vmax.f32 %v130, 0.0
  %v148 = vmax.f32 %v133, 0.0
  %v149 = vmax.f32 %v136, 0.0
  %v150 = vmax.f32 %v139, 0.0
  %v151 = vmax.f32 %v142, 0.0
  %v152 = vld [vmem:[%s1 + $0x40] sm:$0xff]
  %v153 = vld [vmem:[%s1 + $0x48] sm:$0xff]
  %v154 = vld [vmem:[%s1 + $0x50] sm:$0xff]
  %v155 = vld [vmem:[%s1 + $0x58] sm:$0xff]
  %v156 = vld [vmem:[%s1 + $0x60] sm:$0xff]
  %v157 = vld [vmem:[%s1 + $0x68] sm:$0xff]
  %v158 = vld [vmem:[%s1 + $0x70] sm:$0xff]
  %v159 = vld [vmem:[%s1 + $0x78] sm:$0xff]
  %v160 = vld [vmem:[%s2 + $0x40] sm:$0xff]
  %v161 = vld [vmem:[%s2 + $0x48] sm:$0xff]
  %v162 = vld [vmem:[%s2 + $0x50] sm:$0xff]
  %v163 = vld [vmem:[%s2 + $0x58] sm:$0xff]
  %v164 = vld [vmem:[%s2 + $0x60] sm:$0xff]
  %v165 = vld [vmem:[%s2 + $0x68] sm:$0xff]
  %v166 = vld [vmem:[%s2 + $0x70] sm:$0xff]
  %v167 = vld [vmem:[%s2 + $0x78] sm:$0xff]
  %169 = vset.pattern.permute.xlu0 0
  %170 = vperm.xlu0 %169, %v160
  %v171 = vpop.permute.xlu0 %170
  %174 = vset.pattern.permute.xlu0 0
  %175 = vperm.xlu0 %174, %v161
  %v176 = vpop.permute.xlu0 %175
  %179 = vset.pattern.permute.xlu0 0
  %180 = vperm.xlu0 %179, %v162
  %v181 = vpop.permute.xlu0 %180
  %184 = vset.pattern.permute.xlu0 0
  %185 = vperm.xlu0 %184, %v163
  %v186 = vpop.permute.xlu0 %185
  %189 = vset.pattern.permute.xlu0 0
  %190 = vperm.xlu0 %189, %v164
  %v191 = vpop.permute.xlu0 %190
  %194 = vset.pattern.permute.xlu0 0
  %195 = vperm.xlu0 %194, %v165
  %v196 = vpop.permute.xlu0 %195
  %199 = vset.pattern.permute.xlu0 0
  %200 = vperm.xlu0 %199, %v166
  %v201 = vpop.permute.xlu0 %200
  %204 = vset.pattern.permute.xlu0 0
  %205 = vperm.xlu0 %204, %v167
  %v206 = vpop.permute.xlu0 %205
  %v209 = vsel %vm78, %v152, 0
  %v212 = vsel %vm78, %v153, 0
  %v215 = vsel %vm78, %v154, 0
  %v218 = vsel %vm78, %v155, 0
  %v221 = vsel %vm78, %v156, 0
  %v224 = vsel %vm78, %v157, 0
  %v227 = vsel %vm78, %v158, 0
  %v230 = vsel %vm78, %v159, 0
  %232 = vmatpush.msra.mxu0 0.0
  %233 = vmatpush.msra.mxu0 0.0
  %234 = vmatpush.msra.mxu0 0.0
  %235 = vmatpush.msra.mxu0 0.0
  %236 = vmatpush.msra.mxu0 0.0
  %237 = vmatpush.msra.mxu0 0.0
  %238 = vmatpush.msra.mxu0 0.0
  %239 = vmatpush.msra.mxu0 0.0
  %240 = vmatpush.msra.mxu0 %v151
  %241 = vmatpush.msra.mxu0 %v150
  %242 = vmatpush.msra.mxu0 %v149
  %243 = vmatpush.msra.mxu0 %v148
  %244 = vmatpush.msra.mxu0 %v147
  %245 = vmatpush.msra.mxu0 %v146
  %246 = vmatpush.msra.mxu0 %v145
  %247 = vmatpush.msra.mxu0 %v144
  %248 = vmatmul.f32.gmra.mxu0 %v209
  %v249 = vpop.f32.mrf.mxu0
  %v250 = vadd.f32 %v171, %v249
  %251 = vmatmul.f32.gmra.mxu0 %v212
  %v252 = vpop.f32.mrf.mxu0
  %v253 = vadd.f32 %v176, %v252
  %254 = vmatmul.f32.gmra.mxu0 %v215
  %v255 = vpop.f32.mrf.mxu0
  %v256 = vadd.f32 %v181, %v255
  %257 = vmatmul.f32.gmra.mxu0 %v218
  %v258 = vpop.f32.mrf.mxu0
  %v259 = vadd.f32 %v186, %v258
  %260 = vmatmul.f32.gmra.mxu0 %v221
  %v261 = vpop.f32.mrf.mxu0
  %v262 = vadd.f32 %v191, %v261
  %263 = vmatmul.f32.gmra.mxu0 %v224
  %v264 = vpop.f32.mrf.mxu0
  %v265 = vadd.f32 %v196, %v264
  %266 = vmatmul.f32.gmra.mxu0 %v227
  %v267 = vpop.f32.mrf.mxu0
  %v268 = vadd.f32 %v201, %v267
  %269 = vmatmul.f32.gmra.mxu0 %v230
  %v270 = vpop.f32.mrf.mxu0
  %v271 = vadd.f32 %v206, %v270
  %272 = vdwg.mxu0
  %v273 = vmax.f32 %v250, 0.0
  %v274 = vmax.f32 %v253, 0.0
  %v275 = vmax.f32 %v256, 0.0
  %v276 = vmax.f32 %v259, 0.0
  %v277 = vmax.f32 %v262, 0.0
  %v278 = vmax.f32 %v265, 0.0
  %v279 = vmax.f32 %v268, 0.0
  %v280 = vmax.f32 %v271, 0.0
  %v281 = vld [vmem:[%s1 + $0x80] sm:$0xff]
  %v282 = vld [vmem:[%s1 + $0x88] sm:$0xff]
  %v283 = vld [vmem:[%s1 + $0x90] sm:$0xff]
  %v284 = vld [vmem:[%s1 + $0x98] sm:$0xff]
  %v285 = vld [vmem:[%s1 + $0xa0] sm:$0xff]
  %v286 = vld [vmem:[%s1 + $0xa8] sm:$0xff]
  %v287 = vld [vmem:[%s1 + $0xb0] sm:$0xff]
  %v288 = vld [vmem:[%s1 + $0xb8] sm:$0xff]
  %v289 = vld [vmem:[%s2 + $0x80] sm:$0xff]
  %v290 = vld [vmem:[%s2 + $0x88] sm:$0xff]
  %v291 = vld [vmem:[%s2 + $0x90] sm:$0xff]
  %v292 = vld [vmem:[%s2 + $0x98] sm:$0xff]
  %v293 = vld [vmem:[%s2 + $0xa0] sm:$0xff]
  %v294 = vld [vmem:[%s2 + $0xa8] sm:$0xff]
  %v295 = vld [vmem:[%s2 + $0xb0] sm:$0xff]
  %v296 = vld [vmem:[%s2 + $0xb8] sm:$0xff]
  %298 = vset.pattern.permute.xlu0 0
  %299 = vperm.xlu0 %298, %v289
  %v300 = vpop.permute.xlu0 %299
  %303 = vset.pattern.permute.xlu0 0
  %304 = vperm.xlu0 %303, %v290
  %v305 = vpop.permute.xlu0 %304
  %308 = vset.pattern.permute.xlu0 0
  %309 = vperm.xlu0 %308, %v291
  %v310 = vpop.permute.xlu0 %309
  %313 = vset.pattern.permute.xlu0 0
  %314 = vperm.xlu0 %313, %v292
  %v315 = vpop.permute.xlu0 %314
  %318 = vset.pattern.permute.xlu0 0
  %319 = vperm.xlu0 %318, %v293
  %v320 = vpop.permute.xlu0 %319
  %323 = vset.pattern.permute.xlu0 0
  %324 = vperm.xlu0 %323, %v294
  %v325 = vpop.permute.xlu0 %324
  %328 = vset.pattern.permute.xlu0 0
  %329 = vperm.xlu0 %328, %v295
  %v330 = vpop.permute.xlu0 %329
  %333 = vset.pattern.permute.xlu0 0
  %334 = vperm.xlu0 %333, %v296
  %v335 = vpop.permute.xlu0 %334
  %v338 = vsel %vm78, %v281, 0
  %v341 = vsel %vm78, %v282, 0
  %v344 = vsel %vm78, %v283, 0
  %v347 = vsel %vm78, %v284, 0
  %v350 = vsel %vm78, %v285, 0
  %v353 = vsel %vm78, %v286, 0
  %v356 = vsel %vm78, %v287, 0
  %v359 = vsel %vm78, %v288, 0
  %361 = vmatpush.msra.mxu0 0.0
  %362 = vmatpush.msra.mxu0 0.0
  %363 = vmatpush.msra.mxu0 0.0
  %364 = vmatpush.msra.mxu0 0.0
  %365 = vmatpush.msra.mxu0 0.0
  %366 = vmatpush.msra.mxu0 0.0
  %367 = vmatpush.msra.mxu0 0.0
  %368 = vmatpush.msra.mxu0 0.0
  %369 = vmatpush.msra.mxu0 %v280
  %370 = vmatpush.msra.mxu0 %v279
  %371 = vmatpush.msra.mxu0 %v278
  %372 = vmatpush.msra.mxu0 %v277
  %373 = vmatpush.msra.mxu0 %v276
  %374 = vmatpush.msra.mxu0 %v275
  %375 = vmatpush.msra.mxu0 %v274
  %376 = vmatpush.msra.mxu0 %v273
  %377 = vmatmul.f32.gmra.mxu0 %v338
  %v378 = vpop.f32.mrf.mxu0
  %v379 = vadd.f32 %v300, %v378
  %380 = vmatmul.f32.gmra.mxu0 %v341
  %v381 = vpop.f32.mrf.mxu0
  %v382 = vadd.f32 %v305, %v381
  %383 = vmatmul.f32.gmra.mxu0 %v344
  %v384 = vpop.f32.mrf.mxu0
  %v385 = vadd.f32 %v310, %v384
  %386 = vmatmul.f32.gmra.mxu0 %v347
  %v387 = vpop.f32.mrf.mxu0
  %v388 = vadd.f32 %v315, %v387
  %389 = vmatmul.f32.gmra.mxu0 %v350
  %v390 = vpop.f32.mrf.mxu0
  %v391 = vadd.f32 %v320, %v390
  %392 = vmatmul.f32.gmra.mxu0 %v353
  %v393 = vpop.f32.mrf.mxu0
  %v394 = vadd.f32 %v325, %v393
  %395 = vmatmul.f32.gmra.mxu0 %v356
  %v396 = vpop.f32.mrf.mxu0
  %v397 = vadd.f32 %v330, %v396
  %398 = vmatmul.f32.gmra.mxu0 %v359
  %v399 = vpop.f32.mrf.mxu0
  %v400 = vadd.f32 %v335, %v399
  %401 = vdwg.mxu0
  %v402 = vmax.f32 %v379, 0.0
  %v403 = vmax.f32 %v382, 0.0
  %v404 = vmax.f32 %v385, 0.0
  %v405 = vmax.f32 %v388, 0.0
  %v406 = vmax.f32 %v391, 0.0
  %v407 = vmax.f32 %v394, 0.0
  %v408 = vmax.f32 %v397, 0.0
  %v409 = vmax.f32 %v400, 0.0
  %v410 = vld [vmem:[%s1 + $0xc0] sm:$0xff]
  %v411 = vld [vmem:[%s1 + $0xc8] sm:$0xff]
  %v412 = vld [vmem:[%s1 + $0xd0] sm:$0xff]
  %v413 = vld [vmem:[%s1 + $0xd8] sm:$0xff]
  %v414 = vld [vmem:[%s1 + $0xe0] sm:$0xff]
  %v415 = vld [vmem:[%s1 + $0xe8] sm:$0xff]
  %v416 = vld [vmem:[%s1 + $0xf0] sm:$0xff]
  %v417 = vld [vmem:[%s1 + $0xf8] sm:$0xff]
  %v418 = vld [vmem:[%s2 + $0xc0] sm:$0xff]
  %v419 = vld [vmem:[%s2 + $0xc8] sm:$0xff]
  %v420 = vld [vmem:[%s2 + $0xd0] sm:$0xff]
  %v421 = vld [vmem:[%s2 + $0xd8] sm:$0xff]
  %v422 = vld [vmem:[%s2 + $0xe0] sm:$0xff]
  %v423 = vld [vmem:[%s2 + $0xe8] sm:$0xff]
  %v424 = vld [vmem:[%s2 + $0xf0] sm:$0xff]
  %v425 = vld [vmem:[%s2 + $0xf8] sm:$0xff]
  %427 = vset.pattern.permute.xlu0 0
  %428 = vperm.xlu0 %427, %v418
  %v429 = vpop.permute.xlu0 %428
  %432 = vset.pattern.permute.xlu0 0
  %433 = vperm.xlu0 %432, %v419
  %v434 = vpop.permute.xlu0 %433
  %437 = vset.pattern.permute.xlu0 0
  %438 = vperm.xlu0 %437, %v420
  %v439 = vpop.permute.xlu0 %438
  %442 = vset.pattern.permute.xlu0 0
  %443 = vperm.xlu0 %442, %v421
  %v444 = vpop.permute.xlu0 %443
  %447 = vset.pattern.permute.xlu0 0
  %448 = vperm.xlu0 %447, %v422
  %v449 = vpop.permute.xlu0 %448
  %452 = vset.pattern.permute.xlu0 0
  %453 = vperm.xlu0 %452, %v423
  %v454 = vpop.permute.xlu0 %453
  %457 = vset.pattern.permute.xlu0 0
  %458 = vperm.xlu0 %457, %v424
  %v459 = vpop.permute.xlu0 %458
  %462 = vset.pattern.permute.xlu0 0
  %463 = vperm.xlu0 %462, %v425
  %v464 = vpop.permute.xlu0 %463
  %v467 = vsel %vm78, %v410, 0
  %v470 = vsel %vm78, %v411, 0
  %v473 = vsel %vm78, %v412, 0
  %v476 = vsel %vm78, %v413, 0
  %v479 = vsel %vm78, %v414, 0
  %v482 = vsel %vm78, %v415, 0
  %v485 = vsel %vm78, %v416, 0
  %v488 = vsel %vm78, %v417, 0
  %490 = vmatpush.msra.mxu0 0.0
  %491 = vmatpush.msra.mxu0 0.0
  %492 = vmatpush.msra.mxu0 0.0
  %493 = vmatpush.msra.mxu0 0.0
  %494 = vmatpush.msra.mxu0 0.0
  %495 = vmatpush.msra.mxu0 0.0
  %496 = vmatpush.msra.mxu0 0.0
  %497 = vmatpush.msra.mxu0 0.0
  %498 = vmatpush.msra.mxu0 %v409
  %499 = vmatpush.msra.mxu0 %v408
  %500 = vmatpush.msra.mxu0 %v407
  %501 = vmatpush.msra.mxu0 %v406
  %502 = vmatpush.msra.mxu0 %v405
  %503 = vmatpush.msra.mxu0 %v404
  %504 = vmatpush.msra.mxu0 %v403
  %505 = vmatpush.msra.mxu0 %v402
  %506 = vmatmul.f32.gmra.mxu0 %v467
  %v507 = vpop.f32.mrf.mxu0
  %v508 = vadd.f32 %v429, %v507
  %509 = vmatmul.f32.gmra.mxu0 %v470
  %v510 = vpop.f32.mrf.mxu0
  %v511 = vadd.f32 %v434, %v510
  %512 = vmatmul.f32.gmra.mxu0 %v473
  %v513 = vpop.f32.mrf.mxu0
  %v514 = vadd.f32 %v439, %v513
  %515 = vmatmul.f32.gmra.mxu0 %v476
  %v516 = vpop.f32.mrf.mxu0
  %v517 = vadd.f32 %v444, %v516
  %518 = vmatmul.f32.gmra.mxu0 %v479
  %v519 = vpop.f32.mrf.mxu0
  %v520 = vadd.f32 %v449, %v519
  %521 = vmatmul.f32.gmra.mxu0 %v482
  %v522 = vpop.f32.mrf.mxu0
  %v523 = vadd.f32 %v454, %v522
  %524 = vmatmul.f32.gmra.mxu0 %v485
  %v525 = vpop.f32.mrf.mxu0
  %v526 = vadd.f32 %v459, %v525
  %527 = vmatmul.f32.gmra.mxu0 %v488
  %v528 = vpop.f32.mrf.mxu0
  %v529 = vadd.f32 %v464, %v528
  %530 = vdwg.mxu0
  %v531 = vmax.f32 %v508, 0.0
  %v532 = vmax.f32 %v511, 0.0
  %v533 = vmax.f32 %v514, 0.0
  %v534 = vmax.f32 %v517, 0.0
  %v535 = vmax.f32 %v520, 0.0
  %v536 = vmax.f32 %v523, 0.0
  %v537 = vmax.f32 %v526, 0.0
  %v538 = vmax.f32 %v529, 0.0
  %v539 = vld [vmem:[%s1 + $0x100] sm:$0xff]
  %v540 = vld [vmem:[%s2 + $0x100] sm:$0xff]
  %542 = vset.pattern.permute.xlu0 0
  %543 = vperm.xlu0 %542, %v540
  %v544 = vpop.permute.xlu0 %543
  %v547 = vsel %vm78, %v539, 0
  %549 = vmatpush.msra.mxu0 0.0
  %550 = vmatpush.msra.mxu0 0.0
  %551 = vmatpush.msra.mxu0 0.0
  %552 = vmatpush.msra.mxu0 0.0
  %553 = vmatpush.msra.mxu0 0.0
  %554 = vmatpush.msra.mxu0 0.0
  %555 = vmatpush.msra.mxu0 0.0
  %556 = vmatpush.msra.mxu0 0.0
  %557 = vmatpush.msra.mxu0 %v538
  %558 = vmatpush.msra.mxu0 %v537
  %559 = vmatpush.msra.mxu0 %v536
  %560 = vmatpush.msra.mxu0 %v535
  %561 = vmatpush.msra.mxu0 %v534
  %562 = vmatpush.msra.mxu0 %v533
  %563 = vmatpush.msra.mxu0 %v532
  %564 = vmatpush.msra.mxu0 %v531
  %565 = vmatmul.f32.gmra.mxu0 %v547
  %v566 = vpop.f32.mrf.mxu0
  %v567 = vadd.f32 %v544, %v566
  %568 = vdwg.mxu0
  %569 = vst [vmem:[%s3] sm:$0xff] %v567
  // Predicated region
  $region14: #{_dqn_forward_impl.1} parent=0 // pred_check
    _
  $region15: #{_dqn_forward_impl.1} parent=0 // pred_check_branch
    %571 = sbr.rel (0) target = $region17
  $region16: #{_dqn_forward_impl.1} parent=0 // pred_region
    _
  $region17: #{_dqn_forward_impl.1} parent=0 // pred_fallthru
    _
  // Predicated region
  $region18: #{_dqn_forward_impl.1} parent=0 // pred_check
    _
  $region19: #{_dqn_forward_impl.1} parent=0 // pred_check_branch
    %573 = sbr.rel (0) target = $region21
  $region20: #{_dqn_forward_impl.1} parent=0 // pred_region
    _
  $region21: #{_dqn_forward_impl.1} parent=0 // pred_fallthru
    _

</llo_original>
